<compile_context>
chip_gen: v5e
topology: v5e:2x2
jax: 0.10.0
libtpu: 0.0.40
codegen_flags: <defaults>
</compile_context>

<pallas_src>
import functools

import jax
import jax.numpy as jnp
from jax.experimental import pallas as pl
from jax.experimental.pallas import tpu as pltpu


def _round_up(x, m):
    return ((x + m - 1) // m) * m


def _vmem_budget_bytes():
    """~75% of per-core physical VMEM (~48 MiB v7x, ~96 MiB v5e/v6e)."""
    cap = 64 * 1024 * 1024  # conservative fallback (safe on every generation)
    try:
        info = pltpu.get_tpu_info()
        cap_q = getattr(info, "vmem_capacity_bytes", None)
        if cap_q:
            cap = int(cap_q)
    except Exception:
        pass
    return int(0.75 * cap)


def _pick_th(Hp):
    # Weight HBM traffic is independent of th, so a smaller th frees VMEM for a
    # larger row tile tm; 256-aligned preferred for the 256x256 MXUs (v6e/v7x).
    for cand in (256, 128, 512, 384):
        if Hp % cand == 0:
            return cand
    return 128  # unreachable: Hp is a multiple of 128


# --------------------------------------------------------------------------
# Kernels
# --------------------------------------------------------------------------
def _ffn_resident_kernel(x_ref, w1_ref, b1_ref, w2_ref, b2_ref, o_ref, *,
                         compute_dtype):
    # Weights fully VMEM-resident (constant index_map); single grid axis over rows.
    x = x_ref[...]
    if compute_dtype is not None and x.dtype != compute_dtype:
        x = x.astype(compute_dtype)
    h = jnp.dot(x, w1_ref[...], preferred_element_type=jnp.float32) + b1_ref[...]
    h = jnp.maximum(h, 0.0)
    if compute_dtype is not None:
        h = h.astype(compute_dtype)
    out = jnp.dot(h, w2_ref[...], preferred_element_type=jnp.float32) + b2_ref[...]
    o_ref[...] = out.astype(o_ref.dtype)


def _ffn_streamed_kernel(x_ref, w1_ref, b1_ref, w2_ref, b2_ref, o_ref, *scratch,
                         compute_dtype):
    # Hidden dim streamed on grid axis 1 (reduction, "arbitrary", last).
    # If the output is f32, accumulate directly into the VMEM-resident o_ref;
    # otherwise use the f32 scratch accumulator.
    acc_ref = scratch[0] if scratch else o_ref
    kh = pl.program_id(1)

    @pl.when(kh == 0)
    def _init():
        acc_ref[...] = jnp.zeros_like(acc_ref)

    x = x_ref[...]
    if compute_dtype is not None and x.dtype != compute_dtype:
        x = x.astype(compute_dtype)  # no-op when x was pre-cast in the wrapper
    h = jnp.dot(x, w1_ref[...], preferred_element_type=jnp.float32) + b1_ref[...]
    h = jnp.maximum(h, 0.0)
    if compute_dtype is not None:
        h = h.astype(compute_dtype)
    acc_ref[...] += jnp.dot(h, w2_ref[...], preferred_element_type=jnp.float32)

    @pl.when(kh == pl.num_programs(1) - 1)
    def _finish():
        o_ref[...] = (acc_ref[...] + b2_ref[...]).astype(o_ref.dtype)


# --------------------------------------------------------------------------
# Wrapper
# --------------------------------------------------------------------------
def prepare_ffn_params(w1, b1, w2, b2, *, weight_dtype=None):
    """Pad weights/biases to 128-multiples (and optionally cast the weights),
    ONCE, outside the per-call hot path.  Weights are (in, out)."""
    n_embd, hidden = w1.shape
    assert w2.shape == (hidden, n_embd)
    assert b1.shape == (hidden,) and b2.shape == (n_embd,)
    Np = _round_up(n_embd, 128)
    Hp = _round_up(hidden, 128)
    if weight_dtype is not None:
        w1 = w1.astype(weight_dtype)
        w2 = w2.astype(weight_dtype)
    w1_p = jnp.pad(w1, ((0, Np - n_embd), (0, Hp - hidden)))
    w2_p = jnp.pad(w2, ((0, Hp - hidden), (0, Np - n_embd)))
    # Biases stay f32: they are added to the f32 MXU accumulation.
    b1_p = jnp.pad(b1.astype(jnp.float32), (0, Hp - hidden)).reshape(1, Hp)
    b2_p = jnp.pad(b2.astype(jnp.float32), (0, Np - n_embd)).reshape(1, Np)
    return (w1_p, b1_p, w2_p, b2_p), (n_embd, hidden)


@functools.partial(jax.jit, static_argnames=("n_embd", "hidden", "mxu_dtype"))
def _feed_forward_padded(x, w1_p, b1_p, w2_p, b2_p, *, n_embd, hidden, mxu_dtype):
    orig_shape = x.shape
    out_dtype = x.dtype
    assert x.shape[-1] == n_embd

    M = 1
    for d in x.shape[:-1]:
        M *= d
    x2d = x.reshape(M, n_embd)

    compute_dtype = None
    if mxu_dtype is not None:
        compute_dtype = jnp.dtype(mxu_dtype)
        x2d = x2d.astype(compute_dtype)  # cast once, not per hidden step

    Np, Hp = w1_p.shape

    # ---- budget-driven tile selection (all trace-time Python ints) ----
    budget = _vmem_budget_bytes()
    x_item = x2d.dtype.itemsize
    w_item = w1_p.dtype.itemsize
    out_item = jnp.dtype(out_dtype).itemsize
    c_item = jnp.dtype(compute_dtype).itemsize if compute_dtype is not None else x_item

    w_bytes = (w1_p.size + w2_p.size) * w_item + (b1_p.size + b2_p.size) * 4
    resident = w_bytes <= budget // 3

    if resident:
        th = Hp
        row_bytes = (2 * Np * x_item        # x tile (double-buffered)
                     + 2 * Np * out_item    # out tile (double-buffered)
                     + Hp * 4               # h (f32)
                     + Hp * c_item          # h cast for 2nd matmul
                     + Np * 4)              # f32 result before cast
        tm = (budget - 2 * w_bytes) // row_bytes
    else:
        acc_in_out = (out_dtype == jnp.float32)

        def _tm_for(th):
            slab = 4 * Np * th * w_item + 2 * (th + Np) * 4  # dbl-buffered W1/W2 slabs + biases
            acc_bytes = 0 if acc_in_out else Np * 4
            row = (2 * Np * x_item + 2 * Np * out_item + acc_bytes
                   + th * 4 + th * c_item + Np * 4)
            return max((budget - slab) // row, 0)

        th = _pick_th(Hp)
        tm = _tm_for(th)
        if tm < 256 and th > 128 and Hp % 128 == 0:
            th = 128
            tm = _tm_for(th)

    tm = max(128, min(int(tm), 1024))
    tm = (tm // 128) * 128
    if tm >= 256:                      # prefer 256-aligned tiles for 2x256^2 MXUs
        tm = (tm // 256) * 256
    tm = min(tm, _round_up(M, 128))    # don't waste compute on tiny M
    Mp = _round_up(M, tm)

    x_p = x2d
    if Mp != M or Np != n_embd:
        x_p = jnp.pad(x2d, ((0, Mp - M), (0, Np - n_embd)))

    vmem_limit = int(budget)

    if resident:
        # Weights DMA'd once, reused across all row tiles; no hidden grid axis.
        kernel = functools.partial(_ffn_resident_kernel, compute_dtype=compute_dtype)
        out_p = pl.pallas_call(
            kernel,
            out_shape=jax.ShapeDtypeStruct((Mp, Np), out_dtype),
            grid_spec=pltpu.PrefetchScalarGridSpec(
                num_scalar_prefetch=0,
                grid=(Mp // tm,),
                in_specs=[
                    pl.BlockSpec((tm, Np), lambda i: (i, 0)),   # x rows
                    pl.BlockSpec((Np, Hp), lambda i: (0, 0)),   # W1 (resident)
                    pl.BlockSpec((1, Hp), lambda i: (0, 0)),    # b1
                    pl.BlockSpec((Hp, Np), lambda i: (0, 0)),   # W2 (resident)
                    pl.BlockSpec((1, Np), lambda i: (0, 0)),    # b2
                ],
                out_specs=pl.BlockSpec((tm, Np), lambda i: (i, 0)),
            ),
            compiler_params=pltpu.CompilerParams(
                dimension_semantics=("parallel",),
                vmem_limit_bytes=vmem_limit,
            ),
        )(x_p, w1_p, b1_p, w2_p, b2_p)
    else:
        scratch = [] if acc_in_out else [pltpu.VMEM((tm, Np), jnp.float32)]
        kernel = functools.partial(_ffn_streamed_kernel, compute_dtype=compute_dtype)
        out_p = pl.pallas_call(
            kernel,
            out_shape=jax.ShapeDtypeStruct((Mp, Np), out_dtype),
            grid_spec=pltpu.PrefetchScalarGridSpec(
                num_scalar_prefetch=0,
                grid=(Mp // tm, Hp // th),          # reduction (hidden) axis last
                in_specs=[
                    pl.BlockSpec((tm, Np), lambda i, k: (i, 0)),   # x rows
                    pl.BlockSpec((Np, th), lambda i, k: (0, k)),   # W1 hidden slab
                    pl.BlockSpec((1, th), lambda i, k: (0, k)),    # b1 slice
                    pl.BlockSpec((th, Np), lambda i, k: (k, 0)),   # W2 hidden slab
                    pl.BlockSpec((1, Np), lambda i, k: (0, 0)),    # b2 (invariant)
                ],
                out_specs=pl.BlockSpec((tm, Np), lambda i, k: (i, 0)),
                scratch_shapes=scratch,
            ),
            compiler_params=pltpu.CompilerParams(
                dimension_semantics=("parallel", "arbitrary"),
                vmem_limit_bytes=vmem_limit,
            ),
        )(x_p, w1_p, b1_p, w2_p, b2_p)

    return out_p[:M, :n_embd].reshape(orig_shape)


def make_feed_forward(w1, b1, w2, b2, *, mxu_dtype=None):
    """Pad/cast weights once and return an apply(x) function.

    mxu_dtype="bfloat16" stores the padded weights as bf16 in HBM (halving the
    binding weight DMA stream) and feeds the MXU bf16 operands; accumulation,
    biases and ReLU stay f32 and the output keeps x's dtype.
    """
    weight_dtype = None if mxu_dtype is None else jnp.dtype(mxu_dtype)
    (w1_p, b1_p, w2_p, b2_p), (n_embd, hidden) = prepare_ffn_params(
        w1, b1, w2, b2, weight_dtype=weight_dtype)

    def apply(x):
        return _feed_forward_padded(
            x, w1_p, b1_p, w2_p, b2_p,
            n_embd=n_embd, hidden=hidden, mxu_dtype=mxu_dtype)

    return apply


def _reference(x, w1, b1, w2, b2):
    h = jnp.maximum(x @ w1 + b1, 0.0)
    return h @ w2 + b2


if __name__ == "__main__":
    # Small shapes implied by the module: batch=2, seq=8, n_embd=32, hidden=128.
    B, T, n_embd = 2, 8, 32
    hidden = 4 * n_embd

    key = jax.random.PRNGKey(0)
    kx, kw1, kb1, kw2, kb2 = jax.random.split(key, 5)

    x = jax.random.normal(kx, (B, T, n_embd), dtype=jnp.float32)
    # Weights stored (in, out), i.e. already transposed vs. PyTorch nn.Linear.
    w1 = jax.random.normal(kw1, (n_embd, hidden), dtype=jnp.float32) * 0.02
    b1 = jax.random.normal(kb1, (hidden,), dtype=jnp.float32) * 0.02
    w2 = jax.random.normal(kw2, (hidden, n_embd), dtype=jnp.float32) * 0.02
    b2 = jax.random.normal(kb2, (n_embd,), dtype=jnp.float32) * 0.02

    ref = _reference(x, w1, b1, w2, b2)

    # f32 path (exact vs reference; weights-resident fast path at this size).
    ffn_f32 = make_feed_forward(w1, b1, w2, b2)
    out = jax.block_until_ready(ffn_f32(x))
    assert out.shape == (B, T, n_embd)
    assert jnp.allclose(out, ref, atol=1e-5, rtol=1e-5), "f32 mismatch vs reference"

    # bf16-weight / bf16-MXU path: weights live in HBM as bf16, f32 accumulation.
    ffn_bf16 = make_feed_forward(w1, b1, w2, b2, mxu_dtype="bfloat16")
    out_bf16 = jax.block_until_ready(ffn_bf16(x))
    assert out_bf16.shape == (B, T, n_embd)
    assert jnp.allclose(out_bf16, ref, atol=3e-2, rtol=3e-2), "bf16 mismatch"

    print("KERNEL_OK")
</pallas_src>

<mosaic_0001>
module attributes {stable_mosaic.version = 11 : i64} {
  func.func @_ffn_resident_kernel(%arg0: i32, %arg1: memref<128x128xf32, #tpu.memory_space<vmem>>, %arg2: memref<128x128xf32, #tpu.memory_space<vmem>>, %arg3: memref<1x128xf32, #tpu.memory_space<vmem>>, %arg4: memref<128x128xf32, #tpu.memory_space<vmem>>, %arg5: memref<1x128xf32, #tpu.memory_space<vmem>>, %arg6: memref<128x128xf32, #tpu.memory_space<vmem>>) attributes {dimension_semantics = [#tpu.dimension_semantics<parallel>], iteration_bounds = array<i64: 1>, scalar_prefetch = 0 : i64, scratch_operands = 0 : i64, tpu.core_type = #tpu.core_type<tc>, window_params = [{transform_indices = @transform_0, window_bounds = array<i64: 128, 128>}, {pipeline_mode = #tpu.pipeline_mode<synchronous>, transform_indices = @transform_1, window_bounds = array<i64: 128, 128>}, {pipeline_mode = #tpu.pipeline_mode<synchronous>, transform_indices = @transform_2, window_bounds = array<i64: 1, 128>}, {pipeline_mode = #tpu.pipeline_mode<synchronous>, transform_indices = @transform_3, window_bounds = array<i64: 128, 128>}, {pipeline_mode = #tpu.pipeline_mode<synchronous>, transform_indices = @transform_4, window_bounds = array<i64: 1, 128>}, {transform_indices = @transform_5, window_bounds = array<i64: 128, 128>}]} {
    %c0 = arith.constant 0 : index
    %c0_0 = arith.constant 0 : index
    %0 = vector.load %arg1[%c0, %c0_0] : memref<128x128xf32, #tpu.memory_space<vmem>>, vector<128x128xf32>
    %c0_1 = arith.constant 0 : index
    %c0_2 = arith.constant 0 : index
    %1 = vector.load %arg2[%c0_1, %c0_2] : memref<128x128xf32, #tpu.memory_space<vmem>>, vector<128x128xf32>
    %cst = arith.constant dense<0.000000e+00> : vector<128x128xf32>
    %2 = tpu.matmul %0, %1, %cst {dimension_numbers = #tpu.dot_dimension_numbers<[1], [0], [0], [1], [0, 0, 1, 1], [], []>} : vector<128x128xf32>, vector<128x128xf32>, vector<128x128xf32> -> vector<128x128xf32>
    %c0_3 = arith.constant 0 : index
    %c0_4 = arith.constant 0 : index
    %3 = vector.load %arg3[%c0_3, %c0_4] : memref<1x128xf32, #tpu.memory_space<vmem>>, vector<1x128xf32>
    %4 = vector.broadcast %3 : vector<1x128xf32> to vector<128x128xf32>
    %5 = arith.addf %2, %4 : vector<128x128xf32>
    %cst_5 = arith.constant 0.000000e+00 : f32
    %6 = vector.broadcast %cst_5 : f32 to vector<128x128xf32>
    %7 = arith.maximumf %5, %6 : vector<128x128xf32>
    %c0_6 = arith.constant 0 : index
    %c0_7 = arith.constant 0 : index
    %8 = vector.load %arg4[%c0_6, %c0_7] : memref<128x128xf32, #tpu.memory_space<vmem>>, vector<128x128xf32>
    %cst_8 = arith.constant dense<0.000000e+00> : vector<128x128xf32>
    %9 = tpu.matmul %7, %8, %cst_8 {dimension_numbers = #tpu.dot_dimension_numbers<[1], [0], [0], [1], [0, 0, 1, 1], [], []>} : vector<128x128xf32>, vector<128x128xf32>, vector<128x128xf32> -> vector<128x128xf32>
    %c0_9 = arith.constant 0 : index
    %c0_10 = arith.constant 0 : index
    %10 = vector.load %arg5[%c0_9, %c0_10] : memref<1x128xf32, #tpu.memory_space<vmem>>, vector<1x128xf32>
    %11 = vector.broadcast %10 : vector<1x128xf32> to vector<128x128xf32>
    %12 = arith.addf %9, %11 : vector<128x128xf32>
    %c0_11 = arith.constant 0 : index
    %c0_12 = arith.constant 0 : index
    %13 = vector.load %arg6[%c0_11, %c0_12] : memref<128x128xf32, #tpu.memory_space<vmem>>, vector<128x128xf32>
    tpu.vector_store %arg6[%c0_11, %c0_12], %12 {strides = array<i32>} : memref<128x128xf32, #tpu.memory_space<vmem>>, vector<128x128xf32>,
    return
  }
  func.func @transform_0(%arg0: i32) -> (i32, i32) {
    %c0_i32 = arith.constant 0 : i32
    %c0_i32_0 = arith.constant 0 : i32
    return %arg0, %c0_i32 : i32, i32
  }
  func.func @transform_1(%arg0: i32) -> (i32, i32) {
    %c0_i32 = arith.constant 0 : i32
    %c0_i32_0 = arith.constant 0 : i32
    %c0_i32_1 = arith.constant 0 : i32
    return %c0_i32, %c0_i32_0 : i32, i32
  }
  func.func @transform_2(%arg0: i32) -> (i32, i32) {
    %c0_i32 = arith.constant 0 : i32
    %c0_i32_0 = arith.constant 0 : i32
    %c0_i32_1 = arith.constant 0 : i32
    return %c0_i32, %c0_i32_0 : i32, i32
  }
  func.func @transform_3(%arg0: i32) -> (i32, i32) {
    %c0_i32 = arith.constant 0 : i32
    %c0_i32_0 = arith.constant 0 : i32
    %c0_i32_1 = arith.constant 0 : i32
    return %c0_i32, %c0_i32_0 : i32, i32
  }
  func.func @transform_4(%arg0: i32) -> (i32, i32) {
    %c0_i32 = arith.constant 0 : i32
    %c0_i32_0 = arith.constant 0 : i32
    %c0_i32_1 = arith.constant 0 : i32
    return %c0_i32, %c0_i32_0 : i32, i32
  }
  func.func @transform_5(%arg0: i32) -> (i32, i32) {
    %c0_i32 = arith.constant 0 : i32
    %c0_i32_0 = arith.constant 0 : i32
    return %arg0, %c0_i32 : i32, i32
  }
}

</mosaic_0001>

<llo_original>
// kernel: _feed_forward_padded.1
$region0: #{_feed_forward_padded.1}
  #allocation0 [shape = 'u32[]', space=smem, size = 0x4, offset = 0x4, fixed_abs, tag = 'smem constant byte address 0x4 - core index']
  #allocation1 [shape = 'u32[72,128]{1,0:T(1,128)}', space=vmem, size = 0x9000, scoped, tag = 'internal scratch']
  %s0 = inlined_call_operand.vmem [shape: f32[128,128], index: 0, kind: input, shape index: {}]
  %s1 = inlined_call_operand.vmem [shape: f32[128,128], index: 1, kind: input, shape index: {}]
  %s2 = inlined_call_operand.vmem [shape: f32[1,128], index: 2, kind: input, shape index: {}]
  %s3 = inlined_call_operand.hbm [shape: f32[128,128], index: 3, kind: input, shape index: {}]
  %s4 = inlined_call_operand.vmem [shape: f32[1,128], index: 4, kind: input, shape index: {}]
  %s5 = inlined_call_operand.vmem [shape: f32[128,128], index: 5, kind: output, shape index: {}]
  %s6 = sld [smem:[#allocation0]]
  $region34: #{_feed_forward_padded.1} parent=0
    _
  %s8 = ssub.s32 1, %s6
  %s9 = scalar_select 0, %s8, %s6
  $region1: #{_feed_forward_padded.1} parent=0
    #allocation2 [shape = 'u8[65536]{0}', space=vmem, size = 0x10000, scoped, tag = 'input window, operand 3, single buffered']
    #allocation3 [shape = 's32[1]{0}', space=sflag, size = 0x4, scoped, tag = 'scoped memory for _feed_forward_padded.1']
    %10 = vsyncpa [#allocation3], 0
    // Predicated region
    $region2: #{_feed_forward_padded.1} parent=1 // pred_check
      _
    $region3: #{_feed_forward_padded.1} parent=1 // pred_check_branch
      %12 = sbr.rel (0) target = $region5
    $region4: #{_feed_forward_padded.1} parent=1 // pred_region
      _
    $region5: #{_feed_forward_padded.1} parent=1 // pred_fallthru
      _
    // Predicated region
    $region6: #{_feed_forward_padded.1} parent=1 // pred_check
      _
    $region7: #{_feed_forward_padded.1} parent=1 // pred_check_branch
      %14 = sbr.rel (0) target = $region9
    $region8: #{_feed_forward_padded.1} parent=1 // pred_region
      _
    $region9: #{_feed_forward_padded.1} parent=1 // pred_fallthru
      _
    // Predicated region
    $region10: #{_feed_forward_padded.1} parent=1 // pred_check
      _
    $region11: #{_feed_forward_padded.1} parent=1 // pred_check_branch
      %16 = sbr.rel (0) target = $region13
    $region12: #{_feed_forward_padded.1} parent=1 // pred_region
      _
    $region13: #{_feed_forward_padded.1} parent=1 // pred_fallthru
      _
    // Predicated region
    $region14: #{_feed_forward_padded.1} parent=1 // pred_check
      _
    $region15: #{_feed_forward_padded.1} parent=1 // pred_check_branch
      %18 = sbr.rel (0) target = $region17
    $region16: #{_feed_forward_padded.1} parent=1 // pred_region
      %20 = vsyncadd [#allocation3], 0
      %s21 = sshll.u32 %s3, 4
      %s22 = int_to_ptr.hbm [resolvable:$true] %s21
      %s23 = sshll.u32 [#allocation2], 4
      %s24 = int_to_ptr.vmem [resolvable:$true] %s23
      %29 = dma.hbm_to_vmem [thread:$0]  %s22, 2048, %s24, [#allocation3], 128, 128, 8
    $region17: #{_feed_forward_padded.1} parent=1 // pred_fallthru
      _
    // Predicated region
    $region18: #{_feed_forward_padded.1} parent=1 // pred_check
      _
    $region19: #{_feed_forward_padded.1} parent=1 // pred_check_branch
      %31 = sbr.rel (0) target = $region21
    $region20: #{_feed_forward_padded.1} parent=1 // pred_region
      _
    $region21: #{_feed_forward_padded.1} parent=1 // pred_fallthru
      _
    // Predicated region
    $region22: #{_feed_forward_padded.1} parent=1 // pred_check
      _
    $region23: #{_feed_forward_padded.1} parent=1 // pred_check_branch
      %33 = sbr.rel (0) target = $region25
    $region24: #{_feed_forward_padded.1} parent=1 // pred_region
      %35 = dma.done [#allocation3], 2048
    $region25: #{_feed_forward_padded.1} parent=1 // pred_fallthru
      _
    %v36 = vld [vmem:[%s0] sm:$0xff]
    %v37 = vld [vmem:[%s0 + $0x8] sm:$0xff]
    %v38 = vld [vmem:[%s0 + $0x10] sm:$0xff]
    %v39 = vld [vmem:[%s0 + $0x18] sm:$0xff]
    %v40 = vld [vmem:[%s0 + $0x20] sm:$0xff]
    %v41 = vld [vmem:[%s0 + $0x28] sm:$0xff]
    %v42 = vld [vmem:[%s0 + $0x30] sm:$0xff]
    %v43 = vld [vmem:[%s0 + $0x38] sm:$0xff]
    %v44 = vld [vmem:[%s0 + $0x40] sm:$0xff]
    %v45 = vld [vmem:[%s0 + $0x48] sm:$0xff]
    %v46 = vld [vmem:[%s0 + $0x50] sm:$0xff]
    %v47 = vld [vmem:[%s0 + $0x58] sm:$0xff]
    %v48 = vld [vmem:[%s0 + $0x60] sm:$0xff]
    %v49 = vld [vmem:[%s0 + $0x68] sm:$0xff]
    %v50 = vld [vmem:[%s0 + $0x70] sm:$0xff]
    %v51 = vld [vmem:[%s0 + $0x78] sm:$0xff]
    %v52 = vld [vmem:[%s1] sm:$0xff]
    %v53 = vld [vmem:[%s1 + $0x8] sm:$0xff]
    %v54 = vld [vmem:[%s1 + $0x10] sm:$0xff]
    %v55 = vld [vmem:[%s1 + $0x18] sm:$0xff]
    %v56 = vld [vmem:[%s1 + $0x20] sm:$0xff]
    %v57 = vld [vmem:[%s1 + $0x28] sm:$0xff]
    %v58 = vld [vmem:[%s1 + $0x30] sm:$0xff]
    %v59 = vld [vmem:[%s1 + $0x38] sm:$0xff]
    %v60 = vld [vmem:[%s1 + $0x40] sm:$0xff]
    %v61 = vld [vmem:[%s1 + $0x48] sm:$0xff]
    %v62 = vld [vmem:[%s1 + $0x50] sm:$0xff]
    %v63 = vld [vmem:[%s1 + $0x58] sm:$0xff]
    %v64 = vld [vmem:[%s1 + $0x60] sm:$0xff]
    %v65 = vld [vmem:[%s1 + $0x68] sm:$0xff]
    %v66 = vld [vmem:[%s1 + $0x70] sm:$0xff]
    %v67 = vld [vmem:[%s1 + $0x78] sm:$0xff]
    %v68 = vld [vmem:[%s2] sm:$0x1]
    %v70 = vperm.slane %v68, 0
    %72 = vmatpush.msra.mxu0 %v67
    %73 = vmatpush.msra.mxu0 %v66
    %74 = vmatpush.msra.mxu0 %v65
    %75 = vmatpush.msra.mxu0 %v64
    %76 = vmatpush.msra.mxu0 %v63
    %77 = vmatpush.msra.mxu0 %v62
    %78 = vmatpush.msra.mxu0 %v61
    %79 = vmatpush.msra.mxu0 %v60
    %80 = vmatpush.msra.mxu0 %v59
    %81 = vmatpush.msra.mxu0 %v58
    %82 = vmatpush.msra.mxu0 %v57
    %83 = vmatpush.msra.mxu0 %v56
    %84 = vmatpush.msra.mxu0 %v55
    %85 = vmatpush.msra.mxu0 %v54
    %86 = vmatpush.msra.mxu0 %v53
    %87 = vmatpush.msra.mxu0 %v52
    %88 = vmatmul.f32.gmra.mxu0 %v36
    %v89 = vpop.f32.mrf.mxu0
    %v90 = vadd.f32 %v70, %v89
    %91 = vmatmul.f32.gmra.mxu0 %v37
    %v92 = vpop.f32.mrf.mxu0
    %v93 = vadd.f32 %v70, %v92
    %94 = vmatmul.f32.gmra.mxu0 %v38
    %v95 = vpop.f32.mrf.mxu0
    %v96 = vadd.f32 %v70, %v95
    %97 = vmatmul.f32.gmra.mxu0 %v39
    %v98 = vpop.f32.mrf.mxu0
    %v99 = vadd.f32 %v70, %v98
    %100 = vmatmul.f32.gmra.mxu0 %v40
    %v101 = vpop.f32.mrf.mxu0
    %v102 = vadd.f32 %v70, %v101
    %103 = vmatmul.f32.gmra.mxu0 %v41
    %v104 = vpop.f32.mrf.mxu0
    %v105 = vadd.f32 %v70, %v104
    %106 = vmatmul.f32.gmra.mxu0 %v42
    %v107 = vpop.f32.mrf.mxu0
    %v108 = vadd.f32 %v70, %v107
    %109 = vmatmul.f32.gmra.mxu0 %v43
    %v110 = vpop.f32.mrf.mxu0
    %v111 = vadd.f32 %v70, %v110
    %112 = vmatmul.f32.gmra.mxu0 %v44
    %v113 = vpop.f32.mrf.mxu0
    %v114 = vadd.f32 %v70, %v113
    %115 = vmatmul.f32.gmra.mxu0 %v45
    %v116 = vpop.f32.mrf.mxu0
    %v117 = vadd.f32 %v70, %v116
    %118 = vmatmul.f32.gmra.mxu0 %v46
    %v119 = vpop.f32.mrf.mxu0
    %v120 = vadd.f32 %v70, %v119
    %121 = vmatmul.f32.gmra.mxu0 %v47
    %v122 = vpop.f32.mrf.mxu0
    %v123 = vadd.f32 %v70, %v122
    %124 = vmatmul.f32.gmra.mxu0 %v48
    %v125 = vpop.f32.mrf.mxu0
    %v126 = vadd.f32 %v70, %v125
    %127 = vmatmul.f32.gmra.mxu0 %v49
    %v128 = vpop.f32.mrf.mxu0
    %v129 = vadd.f32 %v70, %v128
    %130 = vmatmul.f32.gmra.mxu0 %v50
    %v131 = vpop.f32.mrf.mxu0
    %v132 = vadd.f32 %v70, %v131
    %133 = vmatmul.f32.gmra.mxu0 %v51
    %v134 = vpop.f32.mrf.mxu0
    %v135 = vadd.f32 %v70, %v134
    %136 = vdwg.mxu0
    %v137 = vmax.f32 %v90, 0.0
    %v138 = vmax.f32 %v93, 0.0
    %v139 = vmax.f32 %v96, 0.0
    %v140 = vmax.f32 %v99, 0.0
    %v141 = vmax.f32 %v102, 0.0
    %v142 = vmax.f32 %v105, 0.0
    %v143 = vmax.f32 %v108, 0.0
    %v144 = vmax.f32 %v111, 0.0
    %v145 = vmax.f32 %v114, 0.0
    %v146 = vmax.f32 %v117, 0.0
    %v147 = vmax.f32 %v120, 0.0
    %v148 = vmax.f32 %v123, 0.0
    %v149 = vmax.f32 %v126, 0.0
    %v150 = vmax.f32 %v129, 0.0
    %v151 = vmax.f32 %v132, 0.0
    %v152 = vmax.f32 %v135, 0.0
    %v153 = vld [vmem:[#allocation2] sm:$0xff]
    %v154 = vld [vmem:[#allocation2 + $0x8] sm:$0xff]
    %v155 = vld [vmem:[#allocation2 + $0x10] sm:$0xff]
    %v156 = vld [vmem:[#allocation2 + $0x18] sm:$0xff]
    %v157 = vld [vmem:[#allocation2 + $0x20] sm:$0xff]
    %v158 = vld [vmem:[#allocation2 + $0x28] sm:$0xff]
    %v159 = vld [vmem:[#allocation2 + $0x30] sm:$0xff]
    %v160 = vld [vmem:[#allocation2 + $0x38] sm:$0xff]
    %v161 = vld [vmem:[#allocation2 + $0x40] sm:$0xff]
    %v162 = vld [vmem:[#allocation2 + $0x48] sm:$0xff]
    %v163 = vld [vmem:[#allocation2 + $0x50] sm:$0xff]
    %v164 = vld [vmem:[#allocation2 + $0x58] sm:$0xff]
    %v165 = vld [vmem:[#allocation2 + $0x60] sm:$0xff]
    %v166 = vld [vmem:[#allocation2 + $0x68] sm:$0xff]
    %v167 = vld [vmem:[#allocation2 + $0x70] sm:$0xff]
    %v168 = vld [vmem:[#allocation2 + $0x78] sm:$0xff]
    %v169 = vld [vmem:[%s4] sm:$0x1]
    %v171 = vperm.slane %v169, 0
    %173 = vmatpush.msra.mxu0 %v168
    %174 = vmatpush.msra.mxu0 %v167
    %175 = vmatpush.msra.mxu0 %v166
    %176 = vmatpush.msra.mxu0 %v165
    %177 = vmatpush.msra.mxu0 %v164
    %178 = vmatpush.msra.mxu0 %v163
    %179 = vmatpush.msra.mxu0 %v162
    %180 = vmatpush.msra.mxu0 %v161
    %181 = vmatpush.msra.mxu0 %v160
    %182 = vmatpush.msra.mxu0 %v159
    %183 = vmatpush.msra.mxu0 %v158
    %184 = vmatpush.msra.mxu0 %v157
    %185 = vmatpush.msra.mxu0 %v156
    %186 = vmatpush.msra.mxu0 %v155
    %187 = vmatpush.msra.mxu0 %v154
    %188 = vmatpush.msra.mxu0 %v153
    %189 = vmatmul.f32.gmra.mxu0 %v137
    %v190 = vpop.f32.mrf.mxu0
    %v191 = vadd.f32 %v171, %v190
    %192 = vmatmul.f32.gmra.mxu0 %v138
    %v193 = vpop.f32.mrf.mxu0
    %v194 = vadd.f32 %v171, %v193
    %195 = vmatmul.f32.gmra.mxu0 %v139
    %v196 = vpop.f32.mrf.mxu0
    %v197 = vadd.f32 %v171, %v196
    %198 = vmatmul.f32.gmra.mxu0 %v140
    %v199 = vpop.f32.mrf.mxu0
    %v200 = vadd.f32 %v171, %v199
    %201 = vmatmul.f32.gmra.mxu0 %v141
    %v202 = vpop.f32.mrf.mxu0
    %v203 = vadd.f32 %v171, %v202
    %204 = vmatmul.f32.gmra.mxu0 %v142
    %v205 = vpop.f32.mrf.mxu0
    %v206 = vadd.f32 %v171, %v205
    %207 = vmatmul.f32.gmra.mxu0 %v143
    %v208 = vpop.f32.mrf.mxu0
    %v209 = vadd.f32 %v171, %v208
    %210 = vmatmul.f32.gmra.mxu0 %v144
    %v211 = vpop.f32.mrf.mxu0
    %v212 = vadd.f32 %v171, %v211
    %213 = vmatmul.f32.gmra.mxu0 %v145
    %v214 = vpop.f32.mrf.mxu0
    %v215 = vadd.f32 %v171, %v214
    %216 = vmatmul.f32.gmra.mxu0 %v146
    %v217 = vpop.f32.mrf.mxu0
    %v218 = vadd.f32 %v171, %v217
    %219 = vmatmul.f32.gmra.mxu0 %v147
    %v220 = vpop.f32.mrf.mxu0
    %v221 = vadd.f32 %v171, %v220
    %222 = vmatmul.f32.gmra.mxu0 %v148
    %v223 = vpop.f32.mrf.mxu0
    %v224 = vadd.f32 %v171, %v223
    %225 = vmatmul.f32.gmra.mxu0 %v149
    %v226 = vpop.f32.mrf.mxu0
    %v227 = vadd.f32 %v171, %v226
    %228 = vmatmul.f32.gmra.mxu0 %v150
    %v229 = vpop.f32.mrf.mxu0
    %v230 = vadd.f32 %v171, %v229
    %231 = vmatmul.f32.gmra.mxu0 %v151
    %v232 = vpop.f32.mrf.mxu0
    %v233 = vadd.f32 %v171, %v232
    %234 = vmatmul.f32.gmra.mxu0 %v152
    %v235 = vpop.f32.mrf.mxu0
    %v236 = vadd.f32 %v171, %v235
    %237 = vdwg.mxu0
    %238 = vst [vmem:[%s5] sm:$0xff] %v191
    %239 = vst [vmem:[%s5 + $0x8] sm:$0xff] %v194
    %240 = vst [vmem:[%s5 + $0x10] sm:$0xff] %v197
    %241 = vst [vmem:[%s5 + $0x18] sm:$0xff] %v200
    %242 = vst [vmem:[%s5 + $0x20] sm:$0xff] %v203
    %243 = vst [vmem:[%s5 + $0x28] sm:$0xff] %v206
    %244 = vst [vmem:[%s5 + $0x30] sm:$0xff] %v209
    %245 = vst [vmem:[%s5 + $0x38] sm:$0xff] %v212
    %246 = vst [vmem:[%s5 + $0x40] sm:$0xff] %v215
    %247 = vst [vmem:[%s5 + $0x48] sm:$0xff] %v218
    %248 = vst [vmem:[%s5 + $0x50] sm:$0xff] %v221
    %249 = vst [vmem:[%s5 + $0x58] sm:$0xff] %v224
    %250 = vst [vmem:[%s5 + $0x60] sm:$0xff] %v227
    %251 = vst [vmem:[%s5 + $0x68] sm:$0xff] %v230
    %252 = vst [vmem:[%s5 + $0x70] sm:$0xff] %v233
    %253 = vst [vmem:[%s5 + $0x78] sm:$0xff] %v236
    // Predicated region
    $region26: #{_feed_forward_padded.1} parent=1 // pred_check
      _
    $region27: #{_feed_forward_padded.1} parent=1 // pred_check_branch
      %255 = sbr.rel (0) target = $region29
    $region28: #{_feed_forward_padded.1} parent=1 // pred_region
      _
    $region29: #{_feed_forward_padded.1} parent=1 // pred_fallthru
      _
    // Predicated region
    $region30: #{_feed_forward_padded.1} parent=1 // pred_check
      _
    $region31: #{_feed_forward_padded.1} parent=1 // pred_check_branch
      %257 = sbr.rel (0) target = $region33
    $region32: #{_feed_forward_padded.1} parent=1 // pred_region
      _
    $region33: #{_feed_forward_padded.1} parent=1 // pred_fallthru
      _
    %258 = vsyncpa [#allocation3], 1

</llo_original>
